<compile_context>
chip_gen: v7x
topology: tpu7x:2x2x1
jax: 0.10.0
libtpu: 0.0.40
codegen_flags: <defaults>
</compile_context>

<pallas_src>
import jax
import jax.numpy as jnp
from jax.experimental import pallas as pl
from jax.experimental.pallas import tpu as pltpu

_MIB = 1024 * 1024


# ---------------------------------------------------------------------------
# Kernels
# ---------------------------------------------------------------------------

def _xw_t_kernel(w1t_ref, x_ref, xwt_ref):
    """xw_t tile (nhid, tmx) = W1^T (nhid, nfeat) . x_tile (tmx, nfeat)^T.

    Lane-dense output (N on the 128-lane axis); standard-lhs / transposed-rhs
    contraction so no explicit transposes are needed in the kernel."""
    xwt = jax.lax.dot_general(
        w1t_ref[...], x_ref[...],
        dimension_numbers=(((1,), (1,)), ((), ())),
        preferred_element_type=jnp.float32)
    xwt_ref[...] = xwt.astype(xwt_ref.dtype)


def _layer1_kernel(adj_ref, xwt_ref, w2t_ref, hw_ref):
    """hw tile (1, tm) = (relu(adj0_tile @ xw) @ W2)^T for one adj0 row tile."""
    # h[r, c] = sum_j adj[r, j] * xw_t[c, j]   -> (tm, nhid), f32 MXU accumulation
    h = jax.lax.dot_general(
        adj_ref[...], xwt_ref[...],
        dimension_numbers=(((1,), (1,)), ((), ())),
        preferred_element_type=jnp.float32)
    h = jnp.maximum(h, 0.0)                     # ReLU kept in f32 on the VPU
    # Dropout is identity in eval/inference mode.
    # TODO(synk): training-mode dropout would need pltpu.prng_seed /
    #             pltpu.prng_random_bits with a seed operand.
    # hw[0, r] = sum_c W2^T[0, c] * h[r, c]    -> (1, tm), lane-dense
    hw = jax.lax.dot_general(
        w2t_ref[...], h,
        dimension_numbers=(((1,), (1,)), ((), ())),
        preferred_element_type=jnp.float32)
    hw_ref[...] = hw.astype(hw_ref.dtype)       # emitted already in compute_dtype


def _layer2_kernel(adj_ref, hw_ref, out_ref):
    """out tile (1, tm) = (adj1_tile @ hw^T)^T for one adj1 row tile."""
    # out[0, r] = sum_j hw[0, j] * adj[r, j]   -> (1, tm), lane-dense f32 store
    out_ref[...] = jax.lax.dot_general(
        hw_ref[...], adj_ref[...],
        dimension_numbers=(((1,), (1,)), ((), ())),
        preferred_element_type=jnp.float32)


# ---------------------------------------------------------------------------
# VMEM / tiling helpers (generation-aware)
# ---------------------------------------------------------------------------

def _round_up(v, m):
    return ((v + m - 1) // m) * m


def _vmem_limit_bytes():
    """Scoped VMEM limit derived from the actual chip (v5e/v6e 128 MiB,
    v7x 64 MiB per TensorCore), with headroom for Mosaic scratch."""
    cap = 64 * _MIB                      # conservative fallback (v7x per-TC)
    try:
        cap = int(pltpu.get_tpu_info().vmem_capacity_bytes)
    except Exception:
        pass
    return min((cap * 3) // 4, 100 * _MIB)


def _pick_block_rows(n, adj_itemsize, resident_bytes, vmem_limit,
                     max_rows=2048, min_rows=128):
    """Largest adj row tile (multiple of 128) whose full working set fits:
    2x double-buffered (rows, n) adj tile + 2x resident operands + headroom."""
    headroom = 4 * _MIB
    usable = vmem_limit - 2 * resident_bytes - headroom
    per_row = 2 * n * adj_itemsize                 # double-buffered stream
    rows = usable // per_row if per_row > 0 else max_rows
    rows = int(max(min_rows, min(max_rows, rows)))
    rows = max(128, (rows // 128) * 128)           # lane-dense output blocks
    # TODO(synk): for N so large that even a 128-row tile blows the budget,
    #             add a column/k grid axis with an f32 accumulator scratch.
    return rows


# ---------------------------------------------------------------------------
# Host-side preprocessing (done ONCE, outside the forward pass)
# ---------------------------------------------------------------------------

def prepare_adjacency(adj, compute_dtype=jnp.bfloat16):
    """Cast an adjacency matrix to the streaming dtype once, outside the
    forward pass, so no per-call N^2 conversion pass hits HBM."""
    return adj.astype(compute_dtype)


# ---------------------------------------------------------------------------
# Forward wrapper
# ---------------------------------------------------------------------------

def fastgcn_forward(x, adj0, adj1, w1, w2, *,
                    compute_dtype=jnp.bfloat16, block_rows=None):
    n, nfeat = x.shape
    nhid = w1.shape[1]
    assert adj0.shape == (n, n) and adj1.shape == (n, n)
    assert w2.shape == (nhid, 1)
    compute_dtype = jnp.dtype(compute_dtype)
    if adj0.dtype != compute_dtype or adj1.dtype != compute_dtype:
        raise ValueError(
            "adj0/adj1 must already be in compute_dtype; cast them once with "
            "prepare_adjacency() outside the forward pass.")

    itemsize = compute_dtype.itemsize
    vmem_limit = _vmem_limit_bytes()

    # ---- row-tile size for the two adjacency-streaming stages ---------------
    resident_bytes = nhid * n * itemsize           # xw_t (largest resident operand)
    if block_rows is None:
        block_rows = _pick_block_rows(n, itemsize, resident_bytes, vmem_limit)
    tm = int(block_rows)
    if tm >= n:
        # Force >=2 row tiles when possible so the "parallel" grid axis can be
        # split across both v7x TensorCores (neutral on v5e/v6e).
        tm = _round_up(pl.cdiv(n, 2), 128) if n >= 256 else n
    tm = min(tm, n)
    grid = (pl.cdiv(n, tm),)

    stream_params = pltpu.CompilerParams(
        dimension_semantics=("parallel",),
        vmem_limit_bytes=vmem_limit)

    # ---- stage 0: xw_t = (x @ W1)^T, lane-dense (nhid, N), row-tiled ---------
    x_tile_budget = 8 * _MIB
    tmx = (x_tile_budget // max(nfeat * x.dtype.itemsize, 1) // 128) * 128
    tmx = int(min(n, max(128, tmx)))
    w1_t = jnp.transpose(w1)                        # (nhid, nfeat), tiny, one-time
    xw_t = pl.pallas_call(
        _xw_t_kernel,
        out_shape=jax.ShapeDtypeStruct((nhid, n), compute_dtype),
        grid=(pl.cdiv(n, tmx),),
        in_specs=[
            pl.BlockSpec((nhid, nfeat), lambda i: (0, 0)),   # W1^T resident
            pl.BlockSpec((tmx, nfeat), lambda i: (i, 0)),    # x row tile (streamed)
        ],
        out_specs=pl.BlockSpec((nhid, tmx), lambda i: (0, i)),
        compiler_params=pltpu.CompilerParams(
            dimension_semantics=("parallel",),
            vmem_limit_bytes=vmem_limit),
    )(w1_t, x)

    w2_t = w2.reshape(1, nhid).astype(jnp.float32)  # tiny, lane-dense projection

    # ---- stage 1: hw (1, N) = (relu(adj0 @ xw) @ W2)^T ----------------------
    hw = pl.pallas_call(
        _layer1_kernel,
        out_shape=jax.ShapeDtypeStruct((1, n), compute_dtype),
        grid=grid,
        in_specs=[
            pl.BlockSpec((tm, n), lambda i: (i, 0)),     # adj0 row tile (streamed)
            pl.BlockSpec((nhid, n), lambda i: (0, 0)),   # xw_t resident, lane-dense
            pl.BlockSpec((1, nhid), lambda i: (0, 0)),   # W2^T resident
        ],
        out_specs=pl.BlockSpec((1, tm), lambda i: (0, i)),
        compiler_params=stream_params,
    )(adj0, xw_t, w2_t)

    # ---- stage 2: out (1, N) = (adj1 @ hw^T)^T -------------------------------
    out = pl.pallas_call(
        _layer2_kernel,
        out_shape=jax.ShapeDtypeStruct((1, n), jnp.float32),
        grid=grid,
        in_specs=[
            pl.BlockSpec((tm, n), lambda i: (i, 0)),     # adj1 row tile (streamed)
            pl.BlockSpec((1, n), lambda i: (0, 0)),      # hw resident, lane-dense
        ],
        out_specs=pl.BlockSpec((1, tm), lambda i: (0, i)),
        compiler_params=stream_params,
    )(adj1, hw)

    # .squeeze() in the PyTorch module -> (N,)
    return out.reshape(n)


# ---------------------------------------------------------------------------
# Reference / init helpers
# ---------------------------------------------------------------------------

def xavier_uniform(key, shape, dtype=jnp.float32):
    fan_in, fan_out = shape
    limit = (6.0 / (fan_in + fan_out)) ** 0.5
    return jax.random.uniform(key, shape, dtype, minval=-limit, maxval=limit)


def fastgcn_reference(x, adj0, adj1, w1, w2):
    hp = jax.lax.Precision.HIGHEST
    xw = jnp.dot(x, w1, precision=hp)
    h = jnp.maximum(jnp.dot(adj0, xw, precision=hp), 0.0)
    hw = jnp.dot(h, w2, precision=hp)
    return jnp.dot(adj1, hw, precision=hp).reshape(-1)


if __name__ == "__main__":
    # Small FastGCN-shaped example: N nodes, nfeat input features, nhid hidden.
    # N=256 makes the auto-picked row grid have 2 tiles, exercising streaming.
    N, NFEAT, NHID = 256, 64, 32

    key = jax.random.PRNGKey(0)
    kx, ka0, ka1, kw1, kw2 = jax.random.split(key, 5)

    x = jax.random.normal(kx, (N, NFEAT), dtype=jnp.float32)

    # Dense row-normalized "adjacency" matrices (sampler output stand-in).
    adj0 = jax.random.uniform(ka0, (N, N), dtype=jnp.float32)
    adj0 = adj0 / jnp.sum(adj0, axis=1, keepdims=True)
    adj1 = jax.random.uniform(ka1, (N, N), dtype=jnp.float32)
    adj1 = adj1 / jnp.sum(adj1, axis=1, keepdims=True)

    # Deterministic Xavier-uniform parameter init (shapes from __init__).
    w1 = xavier_uniform(kw1, (NFEAT, NHID))
    w2 = xavier_uniform(kw2, (NHID, 1))

    ref = fastgcn_reference(x, adj0, adj1, w1, w2)

    # f32 streaming mode: validates the tiled / lane-dense two-stage pipeline.
    out_f32 = jax.block_until_ready(
        fastgcn_forward(x, adj0, adj1, w1, w2, compute_dtype=jnp.float32))
    assert out_f32.shape == (N,)
    assert jnp.allclose(out_f32, ref, atol=5e-3, rtol=5e-3), \
        float(jnp.max(jnp.abs(out_f32 - ref)))

    # bf16 streaming (default performance mode): adjacency cast ONCE up front,
    # looser tolerance for the bf16-quantized adjacency / xw / hw round-trips.
    adj0_c = prepare_adjacency(adj0)
    adj1_c = prepare_adjacency(adj1)
    out_bf16 = jax.block_until_ready(
        fastgcn_forward(x, adj0_c, adj1_c, w1, w2))
    assert out_bf16.shape == (N,)
    assert jnp.allclose(out_bf16, ref, atol=3e-2, rtol=3e-2), \
        float(jnp.max(jnp.abs(out_bf16 - ref)))

    print("KERNEL_OK")
</pallas_src>

<mosaic_0001>
module attributes {stable_mosaic.version = 11 : i64} {
  func.func @_xw_t_kernel(%arg0: i32, %arg1: memref<32x64xf32, #tpu.memory_space<vmem>>, %arg2: memref<256x64xf32, #tpu.memory_space<vmem>>, %arg3: memref<32x256xf32, #tpu.memory_space<vmem>>) attributes {dimension_semantics = [#tpu.dimension_semantics<parallel>], iteration_bounds = array<i64: 1>, scalar_prefetch = 0 : i64, scratch_operands = 0 : i64, tpu.core_type = #tpu.core_type<tc>, window_params = [{pipeline_mode = #tpu.pipeline_mode<synchronous>, transform_indices = @transform_0, window_bounds = array<i64: 32, 64>}, {transform_indices = @transform_1, window_bounds = array<i64: 256, 64>}, {transform_indices = @transform_2, window_bounds = array<i64: 32, 256>}]} {
    %c0 = arith.constant 0 : index
    %c0_0 = arith.constant 0 : index
    %0 = vector.load %arg1[%c0, %c0_0] : memref<32x64xf32, #tpu.memory_space<vmem>>, vector<32x64xf32>
    %c0_1 = arith.constant 0 : index
    %c0_2 = arith.constant 0 : index
    %1 = vector.load %arg2[%c0_1, %c0_2] : memref<256x64xf32, #tpu.memory_space<vmem>>, vector<256x64xf32>
    %cst = arith.constant dense<0.000000e+00> : vector<32x256xf32>
    %2 = tpu.matmul %0, %1, %cst {dimension_numbers = #tpu.dot_dimension_numbers<[1], [1], [0], [0], [0, 0, 1, 0], [], []>} : vector<32x64xf32>, vector<256x64xf32>, vector<32x256xf32> -> vector<32x256xf32>
    %c0_3 = arith.constant 0 : index
    %c0_4 = arith.constant 0 : index
    %3 = vector.load %arg3[%c0_3, %c0_4] : memref<32x256xf32, #tpu.memory_space<vmem>>, vector<32x256xf32>
    tpu.vector_store %arg3[%c0_3, %c0_4], %2 {strides = array<i32>} : memref<32x256xf32, #tpu.memory_space<vmem>>, vector<32x256xf32>,
    return
  }
  func.func @transform_0(%arg0: i32) -> (i32, i32) {
    %c0_i32 = arith.constant 0 : i32
    %c0_i32_0 = arith.constant 0 : i32
    %c0_i32_1 = arith.constant 0 : i32
    return %c0_i32, %c0_i32_0 : i32, i32
  }
  func.func @transform_1(%arg0: i32) -> (i32, i32) {
    %c0_i32 = arith.constant 0 : i32
    %c0_i32_0 = arith.constant 0 : i32
    return %arg0, %c0_i32 : i32, i32
  }
  func.func @transform_2(%arg0: i32) -> (i32, i32) {
    %c0_i32 = arith.constant 0 : i32
    %c0_i32_0 = arith.constant 0 : i32
    return %c0_i32, %arg0 : i32, i32
  }
}

</mosaic_0001>

<llo_original>
// kernel: tpu_custom_call.1
$region0: #{tpu_custom_call.1}
  #allocation0 [shape = 'u32[]', space=smem, size = 0x4, offset = 0x4, fixed_abs, tag = 'smem constant byte address 0x4 - core index']
  #allocation1 [shape = 'u32[144,128]{1,0:T(1,128)}', space=vmem, size = 0x12000, scoped, tag = 'internal scratch']
  %s0 = inlined_call_operand.vmem [shape: f32[32,64], index: 0, kind: input, shape index: {}]
  %s1 = inlined_call_operand.vmem [shape: f32[256,64], index: 1, kind: input, shape index: {}]
  %s2 = inlined_call_operand.hbm [shape: f32[32,256], index: 2, kind: output, shape index: {}]
  %s3 = sld [smem:[#allocation0]]
  $region18: #{tpu_custom_call.1} parent=0
    _
  %s5 = ssub.s32 1, %s3
  %s6 = scalar_select 0, %s5, %s3
  $region1: #{tpu_custom_call.1} parent=0
    #allocation2 [shape = 'u8[32768]{0}', space=vmem, size = 0x8000, scoped, tag = 'output window, operand 0, single buffered']
    #allocation3 [shape = 's32[1]{0}', space=sflag, size = 0x4, scoped, tag = 'scoped memory for tpu_custom_call.1']
    %7 = vsyncpa [#allocation3], 0
    // Predicated region
    $region2: #{tpu_custom_call.1} parent=1 // pred_check
      _
    $region3: #{tpu_custom_call.1} parent=1 // pred_check_branch
      %9 = sbr.rel (0) target = $region5
    $region4: #{tpu_custom_call.1} parent=1 // pred_region
      _
    $region5: #{tpu_custom_call.1} parent=1 // pred_fallthru
      _
    // Predicated region
    $region6: #{tpu_custom_call.1} parent=1 // pred_check
      _
    $region7: #{tpu_custom_call.1} parent=1 // pred_check_branch
      %11 = sbr.rel (0) target = $region9
    $region8: #{tpu_custom_call.1} parent=1 // pred_region
      _
    $region9: #{tpu_custom_call.1} parent=1 // pred_fallthru
      _
    %v12 = vld [vmem:[%s0] sm:$0xff]
    %v13 = vld [vmem:[%s0 + $0x8] sm:$0xff]
    %v14 = vld [vmem:[%s0 + $0x10] sm:$0xff]
    %v15 = vld [vmem:[%s0 + $0x18] sm:$0xff]
    %v16 = vld [vmem:[%s1] sm:$0xff]
    %v17 = vld [vmem:[%s1 + $0x8] sm:$0xff]
    %v18 = vld [vmem:[%s1 + $0x10] sm:$0xff]
    %v19 = vld [vmem:[%s1 + $0x18] sm:$0xff]
    %v20 = vld [vmem:[%s1 + $0x20] sm:$0xff]
    %v21 = vld [vmem:[%s1 + $0x28] sm:$0xff]
    %v22 = vld [vmem:[%s1 + $0x30] sm:$0xff]
    %v23 = vld [vmem:[%s1 + $0x38] sm:$0xff]
    %v24 = vld [vmem:[%s1 + $0x40] sm:$0xff]
    %v25 = vld [vmem:[%s1 + $0x48] sm:$0xff]
    %v26 = vld [vmem:[%s1 + $0x50] sm:$0xff]
    %v27 = vld [vmem:[%s1 + $0x58] sm:$0xff]
    %v28 = vld [vmem:[%s1 + $0x60] sm:$0xff]
    %v29 = vld [vmem:[%s1 + $0x68] sm:$0xff]
    %v30 = vld [vmem:[%s1 + $0x70] sm:$0xff]
    %v31 = vld [vmem:[%s1 + $0x78] sm:$0xff]
    %v32 = vld [vmem:[%s1 + $0x80] sm:$0xff]
    %v33 = vld [vmem:[%s1 + $0x88] sm:$0xff]
    %v34 = vld [vmem:[%s1 + $0x90] sm:$0xff]
    %v35 = vld [vmem:[%s1 + $0x98] sm:$0xff]
    %v36 = vld [vmem:[%s1 + $0xa0] sm:$0xff]
    %v37 = vld [vmem:[%s1 + $0xa8] sm:$0xff]
    %v38 = vld [vmem:[%s1 + $0xb0] sm:$0xff]
    %v39 = vld [vmem:[%s1 + $0xb8] sm:$0xff]
    %v40 = vld [vmem:[%s1 + $0xc0] sm:$0xff]
    %v41 = vld [vmem:[%s1 + $0xc8] sm:$0xff]
    %v42 = vld [vmem:[%s1 + $0xd0] sm:$0xff]
    %v43 = vld [vmem:[%s1 + $0xd8] sm:$0xff]
    %v44 = vld [vmem:[%s1 + $0xe0] sm:$0xff]
    %v45 = vld [vmem:[%s1 + $0xe8] sm:$0xff]
    %v46 = vld [vmem:[%s1 + $0xf0] sm:$0xff]
    %v47 = vld [vmem:[%s1 + $0xf8] sm:$0xff]
    %vm48 = vcmask 523264
    %v50 = vsel %vm48, %v12, 0
    %v53 = vsel %vm48, %v13, 0
    %v56 = vsel %vm48, %v14, 0
    %v59 = vsel %vm48, %v15, 0
    %v62 = vsel %vm48, %v16, 0
    %v65 = vsel %vm48, %v17, 0
    %v68 = vsel %vm48, %v18, 0
    %v71 = vsel %vm48, %v19, 0
    %v74 = vsel %vm48, %v20, 0
    %v77 = vsel %vm48, %v21, 0
    %v80 = vsel %vm48, %v22, 0
    %v83 = vsel %vm48, %v23, 0
    %v86 = vsel %vm48, %v24, 0
    %v89 = vsel %vm48, %v25, 0
    %v92 = vsel %vm48, %v26, 0
    %v95 = vsel %vm48, %v27, 0
    %v98 = vsel %vm48, %v28, 0
    %v101 = vsel %vm48, %v29, 0
    %v104 = vsel %vm48, %v30, 0
    %v107 = vsel %vm48, %v31, 0
    %v110 = vsel %vm48, %v32, 0
    %v113 = vsel %vm48, %v33, 0
    %v116 = vsel %vm48, %v34, 0
    %v119 = vsel %vm48, %v35, 0
    %v122 = vsel %vm48, %v36, 0
    %v125 = vsel %vm48, %v37, 0
    %v128 = vsel %vm48, %v38, 0
    %v131 = vsel %vm48, %v39, 0
    %v134 = vsel %vm48, %v40, 0
    %v137 = vsel %vm48, %v41, 0
    %v140 = vsel %vm48, %v42, 0
    %v143 = vsel %vm48, %v43, 0
    %v146 = vsel %vm48, %v44, 0
    %v149 = vsel %vm48, %v45, 0
    %v152 = vsel %vm48, %v46, 0
    %v155 = vsel %vm48, %v47, 0
    %157 = vmatprep.subr.mxu0 0.0
    %158 = vmatpush1.xpose.msra.mxu0 %v62
    %159 = vmatprep.subr.mxu0 0.0
    %160 = vmatpush1.xpose.msra.mxu0 %v65
    %161 = vmatprep.subr.mxu0 0.0
    %162 = vmatpush1.xpose.msra.mxu0 %v68
    %163 = vmatprep.subr.mxu0 0.0
    %164 = vmatpush1.xpose.msra.mxu0 %v71
    %165 = vmatprep.subr.mxu0 0.0
    %166 = vmatpush1.xpose.msra.mxu0 %v74
    %167 = vmatprep.subr.mxu0 0.0
    %168 = vmatpush1.xpose.msra.mxu0 %v77
    %169 = vmatprep.subr.mxu0 0.0
    %170 = vmatpush1.xpose.msra.mxu0 %v80
    %171 = vmatprep.subr.mxu0 0.0
    %172 = vmatpush1.xpose.msra.mxu0 %v83
    %173 = vmatprep.subr.mxu0 0.0
    %174 = vmatpush1.xpose.msra.mxu0 %v86
    %175 = vmatprep.subr.mxu0 0.0
    %176 = vmatpush1.xpose.msra.mxu0 %v89
    %177 = vmatprep.subr.mxu0 0.0
    %178 = vmatpush1.xpose.msra.mxu0 %v92
    %179 = vmatprep.subr.mxu0 0.0
    %180 = vmatpush1.xpose.msra.mxu0 %v95
    %181 = vmatprep.subr.mxu0 0.0
    %182 = vmatpush1.xpose.msra.mxu0 %v98
    %183 = vmatprep.subr.mxu0 0.0
    %184 = vmatpush1.xpose.msra.mxu0 %v101
    %185 = vmatprep.subr.mxu0 0.0
    %186 = vmatpush1.xpose.msra.mxu0 %v104
    %187 = vmatprep.subr.mxu0 0.0
    %188 = vmatpush1.xpose.msra.mxu0 %v107
    %189 = vmatprep.subr.mxu0 0.0
    %190 = vmatpush1.xpose.msra.mxu0 %v110
    %191 = vmatprep.subr.mxu0 0.0
    %192 = vmatpush1.xpose.msra.mxu0 %v113
    %193 = vmatprep.subr.mxu0 0.0
    %194 = vmatpush1.xpose.msra.mxu0 %v116
    %195 = vmatprep.subr.mxu0 0.0
    %196 = vmatpush1.xpose.msra.mxu0 %v119
    %197 = vmatprep.subr.mxu0 0.0
    %198 = vmatpush1.xpose.msra.mxu0 %v122
    %199 = vmatprep.subr.mxu0 0.0
    %200 = vmatpush1.xpose.msra.mxu0 %v125
    %201 = vmatprep.subr.mxu0 0.0
    %202 = vmatpush1.xpose.msra.mxu0 %v128
    %203 = vmatprep.subr.mxu0 0.0
    %204 = vmatpush1.xpose.msra.mxu0 %v131
    %205 = vmatprep.subr.mxu0 0.0
    %206 = vmatpush1.xpose.msra.mxu0 %v134
    %207 = vmatprep.subr.mxu0 0.0
    %208 = vmatpush1.xpose.msra.mxu0 %v137
    %209 = vmatprep.subr.mxu0 0.0
    %210 = vmatpush1.xpose.msra.mxu0 %v140
    %211 = vmatprep.subr.mxu0 0.0
    %212 = vmatpush1.xpose.msra.mxu0 %v143
    %213 = vmatprep.subr.mxu0 0.0
    %214 = vmatpush1.xpose.msra.mxu0 %v146
    %215 = vmatprep.subr.mxu0 0.0
    %216 = vmatpush1.xpose.msra.mxu0 %v149
    %217 = vmatprep.subr.mxu0 0.0
    %218 = vmatpush1.xpose.msra.mxu0 %v152
    %219 = vmatprep.subr.mxu0 0.0
    %220 = vmatpush1.xpose.msra.mxu0 %v155
    %221 = vmatprep.mubr.f32.mxu0 0.0
    %222 = vmatmul.mubr.f32.gmra.mrb[0].mxu0 %v50
    %v223 = vpop.f32.mrb[0].mxu0
    %v224 = vadd.f32 0.0, %v223
    %v225 = vpop.f32.mrb[0].mxu0
    %v226 = vadd.f32 0.0, %v225
    %227 = vmatprep.mubr.f32.mxu0 0.0
    %228 = vmatmul.mubr.f32.gmra.mrb[0].mxu0 %v53
    %v229 = vpop.f32.mrb[0].mxu0
    %v230 = vadd.f32 0.0, %v229
    %v231 = vpop.f32.mrb[0].mxu0
    %v232 = vadd.f32 0.0, %v231
    %233 = vmatprep.mubr.f32.mxu0 0.0
    %234 = vmatmul.mubr.f32.gmra.mrb[0].mxu0 %v56
    %v235 = vpop.f32.mrb[0].mxu0
    %v236 = vadd.f32 0.0, %v235
    %v237 = vpop.f32.mrb[0].mxu0
    %v238 = vadd.f32 0.0, %v237
    %239 = vmatprep.mubr.f32.mxu0 0.0
    %240 = vmatmul.mubr.f32.gmra.mrb[0].mxu0 %v59
    %v241 = vpop.f32.mrb[0].mxu0
    %v242 = vadd.f32 0.0, %v241
    %v243 = vpop.f32.mrb[0].mxu0
    %v244 = vadd.f32 0.0, %v243
    %245 = vdwg.mxu0
    %246 = vst [vmem:[#allocation2] sm:$0xff] %v224
    %247 = vst [vmem:[#allocation2 + $0x8] sm:$0xff] %v226
    %248 = vst [vmem:[#allocation2 + $0x10] sm:$0xff] %v230
    %249 = vst [vmem:[#allocation2 + $0x18] sm:$0xff] %v232
    %250 = vst [vmem:[#allocation2 + $0x20] sm:$0xff] %v236
    %251 = vst [vmem:[#allocation2 + $0x28] sm:$0xff] %v238
    %252 = vst [vmem:[#allocation2 + $0x30] sm:$0xff] %v242
    %253 = vst [vmem:[#allocation2 + $0x38] sm:$0xff] %v244
    // Predicated region
    $region10: #{tpu_custom_call.1} parent=1 // pred_check
      _
    $region11: #{tpu_custom_call.1} parent=1 // pred_check_branch
      %255 = sbr.rel (0) target = $region13
    $region12: #{tpu_custom_call.1} parent=1 // pred_region
      %s257 = ssub.s32 1024, 1024
      %258 = vsyncadd [#allocation3], %s257
      %s259 = sshll.u32 [#allocation2], 4
      %s260 = int_to_ptr.vmem [resolvable:$true] %s259
      %265 = dma.vmem_to_hbm [thread:$0]  %s260, 1024, %s2, [#allocation3], 256, 256, 16
    $region13: #{tpu_custom_call.1} parent=1 // pred_fallthru
      _
    // Predicated region
    $region14: #{tpu_custom_call.1} parent=1 // pred_check
      _
    $region15: #{tpu_custom_call.1} parent=1 // pred_check_branch
      %267 = sbr.rel (0) target = $region17
    $region16: #{tpu_custom_call.1} parent=1 // pred_region
      %268 = dma.done [#allocation3], 1024
    $region17: #{tpu_custom_call.1} parent=1 // pred_fallthru
      _
    %269 = vsyncpa [#allocation3], 1

</llo_original>
